<compile_context>
chip_gen: v6e
topology: v6e:2x2x1
jax: 0.10.0
libtpu: 0.0.40
codegen_flags: <defaults>
</compile_context>

<pallas_src>
import numpy as np
import jax
import jax.numpy as jnp
from jax.experimental import pallas as pl
from jax.experimental.pallas import tpu as pltpu

ALPHA = 4
_ISSUE_ALL_MAX = 64          # issue-all (per-copy semaphore) path for n_slow <= this
_ROLLING_DEPTH = 8           # in-flight DMAs for the long-clip fallback (v7x-sized)
_TRY_STRIDED_SINGLE_DMA = True


def _slow_indices(T: int, n_slow: int) -> tuple:
    """Replicates trunc(torch.linspace(0, T-1, n_slow)) index selection.

    torch.linspace's default dtype is float32: values are formed in double
    precision, rounded to float32, and only then truncated by .long().  We
    reproduce that rounding so index parity with the PyTorch module holds even
    where the float32 value lands just below/above an integer.
    """
    if n_slow <= 0:
        return ()
    if n_slow == 1:
        return (0,)
    vals = np.linspace(0.0, float(T - 1), num=n_slow, dtype=np.float64)
    vals = vals.astype(np.float32)                     # torch's f32 rounding
    idx = np.trunc(vals).astype(np.int64)              # .long() truncation
    idx = np.clip(idx, 0, T - 1)                       # safety against OOB
    return tuple(int(i) for i in idx)


def _gather_call(frames_flat, slow_idx, out_shape, cost):
    """HBM->HBM DMA gather: one copy per selected temporal index."""
    n_slow = len(slow_idx)
    issue_all = n_slow <= _ISSUE_ALL_MAX
    depth = n_slow if issue_all else _ROLLING_DEPTH

    def kernel(src_ref, dst_ref, sems):
        copies = []

        def start(t):
            cp = pltpu.make_async_copy(
                src_ref.at[:, pl.ds(slow_idx[t], 1), :],   # static index
                dst_ref.at[:, pl.ds(t, 1), :],
                sems.at[t % depth],
            )
            cp.start()
            copies.append(cp)

        if issue_all:
            # Disjoint destinations: issue everything, then retire.
            for t in range(n_slow):
                start(t)
            for cp in copies:
                cp.wait()
        else:
            # Bounded-depth rolling window keeps unrolled code size in check
            # for very long clips while holding `depth` DMAs in flight.
            for t in range(depth):
                start(t)
            for t in range(n_slow):
                copies[t].wait()
                if t + depth < n_slow:
                    start(t + depth)

    return pl.pallas_call(
        kernel,
        out_shape=out_shape,
        grid=(1,),
        in_specs=[pl.BlockSpec(memory_space=pl.ANY)],     # frames stay in HBM
        out_specs=pl.BlockSpec(memory_space=pl.ANY),      # output written via DMA
        scratch_shapes=[pltpu.SemaphoreType.DMA((depth,))],
        cost_estimate=cost,
    )(frames_flat)


def _strided_call(frames_flat, start, stride, n_slow, out_shape, cost):
    """Uniform-spacing case: the whole gather is a single (strided) DMA."""

    def kernel(src_ref, dst_ref, sems):
        if stride == 1:
            src = src_ref.at[:, pl.ds(start, n_slow), :]
        else:
            src = src_ref.at[:, pl.ds(start, n_slow, stride=stride), :]
        cp = pltpu.make_async_copy(src, dst_ref, sems.at[0])
        cp.start()
        cp.wait()

    return pl.pallas_call(
        kernel,
        out_shape=out_shape,
        grid=(1,),
        in_specs=[pl.BlockSpec(memory_space=pl.ANY)],
        out_specs=pl.BlockSpec(memory_space=pl.ANY),
        scratch_shapes=[pltpu.SemaphoreType.DMA((1,))],
        cost_estimate=cost,
    )(frames_flat)


def pack_pathway(frames: jax.Array, alpha: int = ALPHA):
    """Returns [slow_pathway, fast_pathway], matching PackPathway.forward."""
    C, T, H, W = frames.shape
    n_slow = T // alpha

    # Fast pathway is the identity on the input frames (no kernel needed).
    fast = frames

    if n_slow == 0:
        return [jnp.zeros((C, 0, H, W), frames.dtype), fast]

    slow_idx = _slow_indices(T, n_slow)

    hw = H * W
    frames_flat = frames.reshape(C, T, hw)              # free contiguous reshape
    out_shape = jax.ShapeDtypeStruct((C, n_slow, hw), frames.dtype)
    itemsize = frames.dtype.itemsize
    cost = pl.CostEstimate(flops=0, transcendentals=0,
                           bytes_accessed=2 * C * n_slow * hw * itemsize)

    slow_flat = None

    # Uniform arithmetic progression -> collapse to a single DMA descriptor.
    if _TRY_STRIDED_SINGLE_DMA and n_slow >= 2:
        stride = slow_idx[1] - slow_idx[0]
        uniform = stride >= 1 and all(
            slow_idx[t + 1] - slow_idx[t] == stride for t in range(n_slow - 1))
        if uniform:
            try:
                slow_flat = _strided_call(frames_flat, slow_idx[0], stride,
                                          n_slow, out_shape, cost)
                # Force compile + execution here (eager) so any unsupported
                # strided-DMA lowering/runtime error triggers the fallback.
                jax.block_until_ready(slow_flat)
            except Exception:
                slow_flat = None

    if slow_flat is None:
        slow_flat = _gather_call(frames_flat, slow_idx, out_shape, cost)

    slow = slow_flat.reshape(C, n_slow, H, W)
    return [slow, fast]


if __name__ == "__main__":
    key0, key1 = jax.random.split(jax.random.PRNGKey(0))

    def reference_slow(frames, alpha=ALPHA):
        T = frames.shape[1]
        idx = jnp.asarray(_slow_indices(T, T // alpha), dtype=jnp.int32)
        return jnp.take(frames, idx, axis=1)

    # Case 1: uniform spacing (T=16, alpha=4 -> indices [0, 5, 10, 15]);
    # exercises the single-strided-DMA path (or its per-index fallback).
    C, T, H, W = 4, 16, 16, 16
    frames = jax.random.normal(key0, (C, T, H, W), dtype=jnp.float32)
    slow, fast = pack_pathway(frames)
    jax.block_until_ready((slow, fast))
    assert slow.shape == (C, T // ALPHA, H, W)
    assert fast.shape == frames.shape
    assert bool(jnp.all(slow == reference_slow(frames)))
    assert bool(jnp.all(fast == frames))

    # Case 2: non-uniform spacing after truncation (T=12, alpha=4 ->
    # indices [0, 5, 11]); exercises the per-index issue-all DMA path.
    C2, T2, H2, W2 = 3, 12, 8, 16
    frames2 = jax.random.normal(key1, (C2, T2, H2, W2), dtype=jnp.float32)
    slow2, fast2 = pack_pathway(frames2)
    jax.block_until_ready((slow2, fast2))
    assert slow2.shape == (C2, T2 // ALPHA, H2, W2)
    assert bool(jnp.all(slow2 == reference_slow(frames2)))
    assert bool(jnp.all(fast2 == frames2))

    print("KERNEL_OK")
</pallas_src>

<mosaic_0001>
module attributes {stable_mosaic.version = 11 : i64} {
  func.func @kernel(%arg0: i32, %arg1: memref<4x16x256xf32, #tpu.memory_space<any>>, %arg2: memref<4x4x256xf32, #tpu.memory_space<any>>, %arg3: memref<4x!tpu.dma_semaphore, #tpu.memory_space<semaphore_mem>>) attributes {dimension_semantics = [#tpu.dimension_semantics<arbitrary>], iteration_bounds = array<i64: 1>, scalar_prefetch = 0 : i64, scratch_operands = 1 : i64, tpu.core_type = #tpu.core_type<tc>, window_params = [{}, {}]} {
    %c0_i32 = arith.constant 0 : i32
    %c0_i32_0 = arith.constant 0 : i32
    %c0_i32_1 = arith.constant 0 : i32
    %c0_i32_2 = arith.constant 0 : i32
    %0 = tpu.memref_slice %arg1[%c0_i32_0, %c0_i32_1, %c0_i32_2] : memref<4x16x256xf32, #tpu.memory_space<any>> -> memref<4x1x256xf32, #tpu.memory_space<any>>
    %c0_i32_3 = arith.constant 0 : i32
    %c0_i32_4 = arith.constant 0 : i32
    %c0_i32_5 = arith.constant 0 : i32
    %1 = tpu.memref_slice %arg2[%c0_i32_3, %c0_i32_4, %c0_i32_5] : memref<4x4x256xf32, #tpu.memory_space<any>> -> memref<4x1x256xf32, #tpu.memory_space<any>>
    %2 = tpu.memref_slice %arg3[%c0_i32] : memref<4x!tpu.dma_semaphore, #tpu.memory_space<semaphore_mem>> -> memref<1x!tpu.dma_semaphore, #tpu.memory_space<semaphore_mem>>
    %3 = tpu.memref_squeeze %2 : memref<1x!tpu.dma_semaphore, #tpu.memory_space<semaphore_mem>> -> memref<!tpu.dma_semaphore, #tpu.memory_space<semaphore_mem>>
    tpu.enqueue_dma source(%0 : memref<4x1x256xf32, #tpu.memory_space<any>>) target(%1 : memref<4x1x256xf32, #tpu.memory_space<any>>) target_semaphore(%3 : memref<!tpu.dma_semaphore, #tpu.memory_space<semaphore_mem>>)
    %c1_i32 = arith.constant 1 : i32
    %c0_i32_6 = arith.constant 0 : i32
    %c5_i32 = arith.constant 5 : i32
    %c0_i32_7 = arith.constant 0 : i32
    %4 = tpu.memref_slice %arg1[%c0_i32_6, %c5_i32, %c0_i32_7] : memref<4x16x256xf32, #tpu.memory_space<any>> -> memref<4x1x256xf32, #tpu.memory_space<any>>
    %c0_i32_8 = arith.constant 0 : i32
    %c1_i32_9 = arith.constant 1 : i32
    %c0_i32_10 = arith.constant 0 : i32
    %5 = tpu.memref_slice %arg2[%c0_i32_8, %c1_i32_9, %c0_i32_10] : memref<4x4x256xf32, #tpu.memory_space<any>> -> memref<4x1x256xf32, #tpu.memory_space<any>>
    %6 = tpu.memref_slice %arg3[%c1_i32] : memref<4x!tpu.dma_semaphore, #tpu.memory_space<semaphore_mem>> -> memref<1x!tpu.dma_semaphore, #tpu.memory_space<semaphore_mem>>
    %7 = tpu.memref_squeeze %6 : memref<1x!tpu.dma_semaphore, #tpu.memory_space<semaphore_mem>> -> memref<!tpu.dma_semaphore, #tpu.memory_space<semaphore_mem>>
    tpu.enqueue_dma source(%4 : memref<4x1x256xf32, #tpu.memory_space<any>>) target(%5 : memref<4x1x256xf32, #tpu.memory_space<any>>) target_semaphore(%7 : memref<!tpu.dma_semaphore, #tpu.memory_space<semaphore_mem>>)
    %c2_i32 = arith.constant 2 : i32
    %c0_i32_11 = arith.constant 0 : i32
    %c10_i32 = arith.constant 10 : i32
    %c0_i32_12 = arith.constant 0 : i32
    %8 = tpu.memref_slice %arg1[%c0_i32_11, %c10_i32, %c0_i32_12] : memref<4x16x256xf32, #tpu.memory_space<any>> -> memref<4x1x256xf32, #tpu.memory_space<any>>
    %c0_i32_13 = arith.constant 0 : i32
    %c2_i32_14 = arith.constant 2 : i32
    %c0_i32_15 = arith.constant 0 : i32
    %9 = tpu.memref_slice %arg2[%c0_i32_13, %c2_i32_14, %c0_i32_15] : memref<4x4x256xf32, #tpu.memory_space<any>> -> memref<4x1x256xf32, #tpu.memory_space<any>>
    %10 = tpu.memref_slice %arg3[%c2_i32] : memref<4x!tpu.dma_semaphore, #tpu.memory_space<semaphore_mem>> -> memref<1x!tpu.dma_semaphore, #tpu.memory_space<semaphore_mem>>
    %11 = tpu.memref_squeeze %10 : memref<1x!tpu.dma_semaphore, #tpu.memory_space<semaphore_mem>> -> memref<!tpu.dma_semaphore, #tpu.memory_space<semaphore_mem>>
    tpu.enqueue_dma source(%8 : memref<4x1x256xf32, #tpu.memory_space<any>>) target(%9 : memref<4x1x256xf32, #tpu.memory_space<any>>) target_semaphore(%11 : memref<!tpu.dma_semaphore, #tpu.memory_space<semaphore_mem>>)
    %c3_i32 = arith.constant 3 : i32
    %c0_i32_16 = arith.constant 0 : i32
    %c15_i32 = arith.constant 15 : i32
    %c0_i32_17 = arith.constant 0 : i32
    %12 = tpu.memref_slice %arg1[%c0_i32_16, %c15_i32, %c0_i32_17] : memref<4x16x256xf32, #tpu.memory_space<any>> -> memref<4x1x256xf32, #tpu.memory_space<any>>
    %c0_i32_18 = arith.constant 0 : i32
    %c3_i32_19 = arith.constant 3 : i32
    %c0_i32_20 = arith.constant 0 : i32
    %13 = tpu.memref_slice %arg2[%c0_i32_18, %c3_i32_19, %c0_i32_20] : memref<4x4x256xf32, #tpu.memory_space<any>> -> memref<4x1x256xf32, #tpu.memory_space<any>>
    %14 = tpu.memref_slice %arg3[%c3_i32] : memref<4x!tpu.dma_semaphore, #tpu.memory_space<semaphore_mem>> -> memref<1x!tpu.dma_semaphore, #tpu.memory_space<semaphore_mem>>
    %15 = tpu.memref_squeeze %14 : memref<1x!tpu.dma_semaphore, #tpu.memory_space<semaphore_mem>> -> memref<!tpu.dma_semaphore, #tpu.memory_space<semaphore_mem>>
    tpu.enqueue_dma source(%12 : memref<4x1x256xf32, #tpu.memory_space<any>>) target(%13 : memref<4x1x256xf32, #tpu.memory_space<any>>) target_semaphore(%15 : memref<!tpu.dma_semaphore, #tpu.memory_space<semaphore_mem>>)
    %c0_i32_21 = arith.constant 0 : i32
    %c0_i32_22 = arith.constant 0 : i32
    %c0_i32_23 = arith.constant 0 : i32
    %c0_i32_24 = arith.constant 0 : i32
    %16 = tpu.memref_slice %arg1[%c0_i32_22, %c0_i32_23, %c0_i32_24] : memref<4x16x256xf32, #tpu.memory_space<any>> -> memref<4x1x256xf32, #tpu.memory_space<any>>
    %c0_i32_25 = arith.constant 0 : i32
    %c0_i32_26 = arith.constant 0 : i32
    %c0_i32_27 = arith.constant 0 : i32
    %17 = tpu.memref_slice %arg2[%c0_i32_25, %c0_i32_26, %c0_i32_27] : memref<4x4x256xf32, #tpu.memory_space<any>> -> memref<4x1x256xf32, #tpu.memory_space<any>>
    %18 = tpu.memref_slice %arg3[%c0_i32_21] : memref<4x!tpu.dma_semaphore, #tpu.memory_space<semaphore_mem>> -> memref<1x!tpu.dma_semaphore, #tpu.memory_space<semaphore_mem>>
    %19 = tpu.memref_squeeze %18 : memref<1x!tpu.dma_semaphore, #tpu.memory_space<semaphore_mem>> -> memref<!tpu.dma_semaphore, #tpu.memory_space<semaphore_mem>>
    tpu.wait_dma2 semaphore(%19 : memref<!tpu.dma_semaphore, #tpu.memory_space<semaphore_mem>>) src(%16 : memref<4x1x256xf32, #tpu.memory_space<any>>) dst(%17 : memref<4x1x256xf32, #tpu.memory_space<any>>)
    %c1_i32_28 = arith.constant 1 : i32
    %c0_i32_29 = arith.constant 0 : i32
    %c5_i32_30 = arith.constant 5 : i32
    %c0_i32_31 = arith.constant 0 : i32
    %20 = tpu.memref_slice %arg1[%c0_i32_29, %c5_i32_30, %c0_i32_31] : memref<4x16x256xf32, #tpu.memory_space<any>> -> memref<4x1x256xf32, #tpu.memory_space<any>>
    %c0_i32_32 = arith.constant 0 : i32
    %c1_i32_33 = arith.constant 1 : i32
    %c0_i32_34 = arith.constant 0 : i32
    %21 = tpu.memref_slice %arg2[%c0_i32_32, %c1_i32_33, %c0_i32_34] : memref<4x4x256xf32, #tpu.memory_space<any>> -> memref<4x1x256xf32, #tpu.memory_space<any>>
    %22 = tpu.memref_slice %arg3[%c1_i32_28] : memref<4x!tpu.dma_semaphore, #tpu.memory_space<semaphore_mem>> -> memref<1x!tpu.dma_semaphore, #tpu.memory_space<semaphore_mem>>
    %23 = tpu.memref_squeeze %22 : memref<1x!tpu.dma_semaphore, #tpu.memory_space<semaphore_mem>> -> memref<!tpu.dma_semaphore, #tpu.memory_space<semaphore_mem>>
    tpu.wait_dma2 semaphore(%23 : memref<!tpu.dma_semaphore, #tpu.memory_space<semaphore_mem>>) src(%20 : memref<4x1x256xf32, #tpu.memory_space<any>>) dst(%21 : memref<4x1x256xf32, #tpu.memory_space<any>>)
    %c2_i32_35 = arith.constant 2 : i32
    %c0_i32_36 = arith.constant 0 : i32
    %c10_i32_37 = arith.constant 10 : i32
    %c0_i32_38 = arith.constant 0 : i32
    %24 = tpu.memref_slice %arg1[%c0_i32_36, %c10_i32_37, %c0_i32_38] : memref<4x16x256xf32, #tpu.memory_space<any>> -> memref<4x1x256xf32, #tpu.memory_space<any>>
    %c0_i32_39 = arith.constant 0 : i32
    %c2_i32_40 = arith.constant 2 : i32
    %c0_i32_41 = arith.constant 0 : i32
    %25 = tpu.memref_slice %arg2[%c0_i32_39, %c2_i32_40, %c0_i32_41] : memref<4x4x256xf32, #tpu.memory_space<any>> -> memref<4x1x256xf32, #tpu.memory_space<any>>
    %26 = tpu.memref_slice %arg3[%c2_i32_35] : memref<4x!tpu.dma_semaphore, #tpu.memory_space<semaphore_mem>> -> memref<1x!tpu.dma_semaphore, #tpu.memory_space<semaphore_mem>>
    %27 = tpu.memref_squeeze %26 : memref<1x!tpu.dma_semaphore, #tpu.memory_space<semaphore_mem>> -> memref<!tpu.dma_semaphore, #tpu.memory_space<semaphore_mem>>
    tpu.wait_dma2 semaphore(%27 : memref<!tpu.dma_semaphore, #tpu.memory_space<semaphore_mem>>) src(%24 : memref<4x1x256xf32, #tpu.memory_space<any>>) dst(%25 : memref<4x1x256xf32, #tpu.memory_space<any>>)
    %c3_i32_42 = arith.constant 3 : i32
    %c0_i32_43 = arith.constant 0 : i32
    %c15_i32_44 = arith.constant 15 : i32
    %c0_i32_45 = arith.constant 0 : i32
    %28 = tpu.memref_slice %arg1[%c0_i32_43, %c15_i32_44, %c0_i32_45] : memref<4x16x256xf32, #tpu.memory_space<any>> -> memref<4x1x256xf32, #tpu.memory_space<any>>
    %c0_i32_46 = arith.constant 0 : i32
    %c3_i32_47 = arith.constant 3 : i32
    %c0_i32_48 = arith.constant 0 : i32
    %29 = tpu.memref_slice %arg2[%c0_i32_46, %c3_i32_47, %c0_i32_48] : memref<4x4x256xf32, #tpu.memory_space<any>> -> memref<4x1x256xf32, #tpu.memory_space<any>>
    %30 = tpu.memref_slice %arg3[%c3_i32_42] : memref<4x!tpu.dma_semaphore, #tpu.memory_space<semaphore_mem>> -> memref<1x!tpu.dma_semaphore, #tpu.memory_space<semaphore_mem>>
    %31 = tpu.memref_squeeze %30 : memref<1x!tpu.dma_semaphore, #tpu.memory_space<semaphore_mem>> -> memref<!tpu.dma_semaphore, #tpu.memory_space<semaphore_mem>>
    tpu.wait_dma2 semaphore(%31 : memref<!tpu.dma_semaphore, #tpu.memory_space<semaphore_mem>>) src(%28 : memref<4x1x256xf32, #tpu.memory_space<any>>) dst(%29 : memref<4x1x256xf32, #tpu.memory_space<any>>)
    return
  }
}

</mosaic_0001>

<llo_original>
// kernel: tpu_custom_call.1
$region0: #{tpu_custom_call.1}
  #allocation0 [shape = 'u32[]', space=smem, size = 0x4, offset = 0x4, fixed_abs, tag = 'smem constant byte address 0x4 - core index']
  #allocation1 [shape = 'u32[144,128]{1,0:T(1,128)}', space=vmem, size = 0x12000, scoped, tag = 'internal scratch']
  #allocation2 [shape = 's32[4]{0}', space=sflag, size = 0x10, scoped, tag = 'scratch operand']
  #allocation3 [shape = 's32[]', space=sflag, size = 0x4, offset = 0, fixed_abs, tag = 'sflag constant byte address 0x0 - dummy sync flag']
  #allocation5 [shape = 's32[]', space=sflag, size = 0x4, offset = 0, fixed_abs, tag = 'sflag constant byte address 0x0 - dummy sync flag']
  #allocation7 [shape = 's32[]', space=sflag, size = 0x4, offset = 0, fixed_abs, tag = 'sflag constant byte address 0x0 - dummy sync flag']
  #allocation9 [shape = 's32[]', space=sflag, size = 0x4, offset = 0, fixed_abs, tag = 'sflag constant byte address 0x0 - dummy sync flag']
  %s0 = inlined_call_operand.hbm [shape: f32[4,16,256], index: 0, kind: input, shape index: {}]
  %s1 = inlined_call_operand.hbm [shape: f32[4,4,256], index: 1, kind: output, shape index: {}]
  %s2 = sld [smem:[#allocation0]]
  $region2: #{tpu_custom_call.1} parent=0
    _
  %s4 = ssub.s32 1, %s2
  %s5 = scalar_select 0, %s4, %s2
  $region1: #{tpu_custom_call.1} parent=0
    #allocation4 [shape = 'u32[6]{0}', space=smem, size = 0x18, scoped, tag = 'DMA stride descriptor']
    #allocation6 [shape = 'u32[6]{0}', space=smem, size = 0x18, scoped, tag = 'DMA stride descriptor']
    #allocation8 [shape = 'u32[6]{0}', space=smem, size = 0x18, scoped, tag = 'DMA stride descriptor']
    #allocation10 [shape = 'u32[6]{0}', space=smem, size = 0x18, scoped, tag = 'DMA stride descriptor']
    %s7 = sshll.u32 1, 14
    %s8 = sxor.u32 4294967295, %s7
    %12 = sst [smem:[#allocation4]] 512
    %s13 = scalar_lea.smem [#allocation4], 1
    %14 = sst [smem:[%s13]] 128
    %s15 = scalar_lea.smem [#allocation4], 2
    %16 = sst [smem:[%s15]] 2
    %s17 = scalar_lea.smem [#allocation4], 3
    %18 = sst [smem:[%s17]] 128
    %s19 = scalar_lea.smem [#allocation4], 4
    %20 = sst [smem:[%s19]] 64
    %s21 = scalar_lea.smem [#allocation4], 5
    %22 = sst [smem:[%s21]] 1
    %24 = dma.general %s0, 128, %s1, [#allocation2], 131072, [#allocation4], 0, 0
    %s25 = scalar_lea.hbm %s0, 80
    %s26 = scalar_lea.hbm %s1, 16
    %s27 = scalar_lea.sflag [#allocation2], 1
    %s29 = sshll.u32 1, 14
    %s30 = sxor.u32 4294967295, %s29
    %34 = sst [smem:[#allocation6]] 512
    %s35 = scalar_lea.smem [#allocation6], 1
    %36 = sst [smem:[%s35]] 128
    %s37 = scalar_lea.smem [#allocation6], 2
    %38 = sst [smem:[%s37]] 2
    %s39 = scalar_lea.smem [#allocation6], 3
    %40 = sst [smem:[%s39]] 128
    %s41 = scalar_lea.smem [#allocation6], 4
    %42 = sst [smem:[%s41]] 64
    %s43 = scalar_lea.smem [#allocation6], 5
    %44 = sst [smem:[%s43]] 1
    %46 = dma.general %s25, 128, %s26, %s27, 131072, [#allocation6], 0, 0
    %s47 = scalar_lea.hbm %s0, 288
    %s48 = scalar_lea.hbm %s1, 32
    %s49 = scalar_lea.sflag [#allocation2], 2
    %s51 = sshll.u32 1, 14
    %s52 = sxor.u32 4294967295, %s51
    %56 = sst [smem:[#allocation8]] 512
    %s57 = scalar_lea.smem [#allocation8], 1
    %58 = sst [smem:[%s57]] 128
    %s59 = scalar_lea.smem [#allocation8], 2
    %60 = sst [smem:[%s59]] 2
    %s61 = scalar_lea.smem [#allocation8], 3
    %62 = sst [smem:[%s61]] 128
    %s63 = scalar_lea.smem [#allocation8], 4
    %64 = sst [smem:[%s63]] 64
    %s65 = scalar_lea.smem [#allocation8], 5
    %66 = sst [smem:[%s65]] 1
    %68 = dma.general %s47, 128, %s48, %s49, 131072, [#allocation8], 0, 0
    %s69 = scalar_lea.hbm %s0, 368
    %s70 = scalar_lea.hbm %s1, 48
    %s71 = scalar_lea.sflag [#allocation2], 3
    %s73 = sshll.u32 1, 14
    %s74 = sxor.u32 4294967295, %s73
    %78 = sst [smem:[#allocation10]] 512
    %s79 = scalar_lea.smem [#allocation10], 1
    %80 = sst [smem:[%s79]] 128
    %s81 = scalar_lea.smem [#allocation10], 2
    %82 = sst [smem:[%s81]] 2
    %s83 = scalar_lea.smem [#allocation10], 3
    %84 = sst [smem:[%s83]] 128
    %s85 = scalar_lea.smem [#allocation10], 4
    %86 = sst [smem:[%s85]] 64
    %s87 = scalar_lea.smem [#allocation10], 5
    %88 = sst [smem:[%s87]] 1
    %90 = dma.general %s69, 128, %s70, %s71, 131072, [#allocation10], 0, 0
    %s91 = smul.u32 4, 1
    %s92 = smul.u32 %s91, 2
    %s93 = sshll.u32 %s92, 4
    %94 = dma.done [#allocation2], %s93
    %s95 = sshll.u32 %s92, 4
    %96 = dma.done %s27, %s95
    %s97 = sshll.u32 %s92, 4
    %98 = dma.done %s49, %s97
    %s99 = sshll.u32 %s92, 4
    %100 = dma.done %s71, %s99
  %101 = vsyncmov [#allocation2]
  %s102 = vpop.sfrf %101
  %p103 = scmp.eq.s32.totalorder %s102, 0
  %p104 = pneg %p103
  %106 = shalt.err (%p104)
  %s107 = scalar_lea.sflag [#allocation2], 1
  %108 = vsyncmov %s107
  %s109 = vpop.sfrf %108
  %p110 = scmp.eq.s32.totalorder %s109, 0
  %p111 = pneg %p110
  %113 = shalt.err (%p111)
  %s114 = scalar_lea.sflag [#allocation2], 2
  %115 = vsyncmov %s114
  %s116 = vpop.sfrf %115
  %p117 = scmp.eq.s32.totalorder %s116, 0
  %p118 = pneg %p117
  %120 = shalt.err (%p118)
  %s121 = scalar_lea.sflag [#allocation2], 3
  %122 = vsyncmov %s121
  %s123 = vpop.sfrf %122
  %p124 = scmp.eq.s32.totalorder %s123, 0
  %p125 = pneg %p124
  %127 = shalt.err (%p125)

</llo_original>
